<compile_context>
chip_gen: v5e
topology: v5e:2x2
jax: 0.10.0
libtpu: 0.0.40
codegen_flags: <defaults>
</compile_context>

<pallas_src>
import jax
import jax.numpy as jnp
from jax.experimental import pallas as pl
from jax.experimental.pallas import tpu as pltpu

LAYERS = (32, 64, 128, 256)
KERNEL_SIZE = 3
DILATIONS = tuple(2 ** i for i in range(len(LAYERS)))   # 1, 2, 4, 8


def _vmem_capacity_bytes():
    try:
        return int(pltpu.get_tpu_info().vmem_capacity_bytes)
    except Exception:
        return 64 * 1024 * 1024        # conservative default (v7x per-TC VMEM)


def _pack_params(params, mxu_dtype):
    """Pack (K, Cin, Cout) conv weights into fused (K*Cin, Cout) matrices."""
    (w1, b1), (w2, b2), (w3, b3), (w4, b4), (wc, bc) = params
    f32 = jnp.float32
    return [
        w1.reshape(KERNEL_SIZE, LAYERS[0]).astype(f32), b1.astype(f32),   # Cin=1, VPU
        w2.reshape(KERNEL_SIZE * LAYERS[0], LAYERS[1]).astype(mxu_dtype), b2.astype(f32),
        w3.reshape(KERNEL_SIZE * LAYERS[1], LAYERS[2]).astype(mxu_dtype), b3.astype(f32),
        w4.reshape(KERNEL_SIZE * LAYERS[2], LAYERS[3]).astype(mxu_dtype), b4.astype(f32),
        wc.reshape(LAYERS[-1], 1).astype(mxu_dtype), bc.astype(f32),      # (256,1) column
    ]


def _make_kernel(M, Tp, mxu_dtype):
    def kernel(x_ref, w1, b1, w2, b2, w3, b3, w4, b4, wc, bc, o_ref):
        # time index of each row within its own (padded) sequence
        t_in_seq = jax.lax.broadcasted_iota(jnp.int32, (M, 1), 0) % Tp
        # hoisted causal masks, computed once per distinct shift value
        needed = sorted({s * d for d in DILATIONS for s in (1, 2)})
        lt_mask = {s: t_in_seq < s for s in needed if 0 < s < Tp}

        def causal_shift(h, s):
            # out[t] = h[t - s] within each sequence, 0 for t < s.
            # (roll may wrap rows across sequence boundaries; every such row
            #  has t_in_seq < s and is zeroed, so causal padding is exact.)
            if s == 0:
                return h
            if s >= Tp:
                return jnp.zeros_like(h)
            rolled = pltpu.roll(h, shift=s, axis=0)
            return jnp.where(lt_mask[s], 0.0, rolled)

        x = x_ref[...]                                      # (M, 1) f32

        # ---- layer 1: pad(2) + Conv1d(1 -> 32, k=3, d=1) + ReLU  (VPU path)
        d = DILATIONS[0]
        w1v = w1[...]                                       # (3, 32) f32
        h = (causal_shift(x, 2 * d) * w1v[0:1, :]
             + causal_shift(x, 1 * d) * w1v[1:2, :]
             + x * w1v[2:3, :])
        h = jnp.maximum(h + b1[...], 0.0)                   # (M, 32) f32

        # ---- layers 2..4: fused 3-tap causal dilated conv on the MXU
        #      (bf16 operands, f32 accumulation)
        for (w_ref, b_ref), d in zip(((w2, b2), (w3, b3), (w4, b4)),
                                     DILATIONS[1:]):
            hcat = jnp.concatenate(
                [causal_shift(h, (KERNEL_SIZE - 1 - k) * d)
                 for k in range(KERNEL_SIZE)],
                axis=1).astype(mxu_dtype)                   # (M, 3*Cin)
            h = jnp.maximum(
                jnp.dot(hcat, w_ref[...],
                        preferred_element_type=jnp.float32) + b_ref[...],
                0.0)                                        # (M, Cout) f32

        # ---- classifier Linear(256 -> 1): MXU dot (epilogue, MXU otherwise idle)
        out = jnp.dot(h.astype(mxu_dtype), wc[...],
                      preferred_element_type=jnp.float32) + bc[...]   # (M, 1)
        o_ref[...] = out

    return kernel


def tcn_forward(x, params, block_b=None, use_bf16=True):
    """x: (B, T) float32 -> (B, T) float32 (matches the torch forward)."""
    B, T = x.shape
    mxu_dtype = jnp.bfloat16 if use_bf16 else jnp.float32
    Tp = ((T + 7) // 8) * 8                        # sublane-align the time axis

    # generation-aware row budget & scoped-VMEM limit
    vmem = _vmem_capacity_bytes()
    if vmem >= 96 * 1024 * 1024:                   # v5e / v6e (128 MiB physical)
        max_rows, vmem_limit = 8192, 96 * 1024 * 1024
    else:                                          # v7x (64 MiB per TensorCore)
        max_rows, vmem_limit = 4096, 48 * 1024 * 1024

    if block_b is None:
        Bt = max(1, min(B, max_rows // Tp))
        if B >= 2:                                 # keep >= 2 grid steps so both
            Bt = min(Bt, max(1, B // 2))           # v7x TensorCores get work
    else:
        Bt = block_b
    Bp = ((B + Bt - 1) // Bt) * Bt                 # pad batch: grid divides evenly
    M = Bt * Tp

    xp = jnp.pad(x.astype(jnp.float32), ((0, Bp - B), (0, Tp - T)))
    flat = _pack_params(params, mxu_dtype)

    def const_spec(arr):
        nd = arr.ndim
        return pl.BlockSpec(arr.shape, lambda i, _nd=nd: (0,) * _nd)

    out_flat = pl.pallas_call(
        _make_kernel(M, Tp, mxu_dtype),
        out_shape=jax.ShapeDtypeStruct((Bp * Tp, 1), jnp.float32),
        grid_spec=pltpu.PrefetchScalarGridSpec(
            num_scalar_prefetch=0,
            grid=(Bp // Bt,),
            in_specs=[pl.BlockSpec((M, 1), lambda i: (i, 0))]
                     + [const_spec(a) for a in flat],
            out_specs=pl.BlockSpec((M, 1), lambda i: (i, 0)),
        ),
        compiler_params=pltpu.CompilerParams(
            dimension_semantics=("parallel",),
            vmem_limit_bytes=vmem_limit),
    )(xp.reshape(Bp * Tp, 1), *flat)
    return out_flat.reshape(Bp, Tp)[:B, :T]


def init_params(key):
    """Deterministic init mimicking torch's default uniform(-1/sqrt(fan_in))."""
    params = []
    c = 1
    keys = jax.random.split(key, len(LAYERS) + 1)
    for i, l in enumerate(LAYERS):
        bound = 1.0 / (c * KERNEL_SIZE) ** 0.5
        kw, kb = jax.random.split(keys[i])
        # stored as (k, c_in, c_out)  (torch Conv1d weight is (c_out, c_in, k))
        w = jax.random.uniform(kw, (KERNEL_SIZE, c, l), jnp.float32, -bound, bound)
        b = jax.random.uniform(kb, (1, l), jnp.float32, -bound, bound)
        params.append((w, b))
        c = l
    kw, kb = jax.random.split(keys[-1])
    bound = 1.0 / c ** 0.5
    wc = jax.random.uniform(kw, (1, c), jnp.float32, -bound, bound)   # Linear(256,1)
    bc = jax.random.uniform(kb, (1, 1), jnp.float32, -bound, bound)
    params.append((wc, bc))
    return params


def ref_forward(x, params):
    """Pure-JAX f32 reference with identical semantics (for validation)."""
    B, T = x.shape
    h = x[:, :, None].astype(jnp.float32)                 # (B, T, 1)
    d = 1
    for w, b in params[:4]:
        hp = jnp.pad(h, ((0, 0), (2 * d, 0), (0, 0)))     # ConstantPad1d((2d, 0))
        out = sum(jnp.einsum('btc,co->bto', hp[:, k * d:k * d + T, :], w[k])
                  for k in range(KERNEL_SIZE))
        h = jax.nn.relu(out + b[None])
        d *= 2
    wc, bc = params[4]
    return jnp.sum(h * wc[None], axis=-1) + bc[0, 0]      # (B, T)


if __name__ == "__main__":
    key = jax.random.PRNGKey(0)
    kx, kp = jax.random.split(key)
    B, T = 2, 16                     # x: (batch, seq_len) as in torch forward
    x = jax.random.normal(kx, (B, T), jnp.float32)
    params = init_params(kp)

    ref = ref_forward(x, params)

    # structural check: pure-f32 kernel vs f32 reference (tight tolerance)
    out_f32 = jax.block_until_ready(tcn_forward(x, params, use_bf16=False))
    assert out_f32.shape == (B, T), out_f32.shape
    if not jnp.allclose(out_f32, ref, atol=2e-3, rtol=2e-3):
        raise AssertionError("f32 Pallas kernel does not match JAX reference")

    # production path: bf16 MXU operands, f32 accumulation (looser tolerance)
    out = jax.block_until_ready(tcn_forward(x, params))
    assert out.shape == (B, T), out.shape
    if not jnp.allclose(out, ref, atol=3e-2, rtol=3e-2):
        raise AssertionError("bf16 Pallas kernel does not match JAX reference")

    print("KERNEL_OK")
</pallas_src>

<mosaic_0001>
module attributes {stable_mosaic.version = 11 : i64} {
  func.func @kernel(%arg0: i32, %arg1: memref<16x1xf32, #tpu.memory_space<vmem>>, %arg2: memref<3x32xf32, #tpu.memory_space<vmem>>, %arg3: memref<1x32xf32, #tpu.memory_space<vmem>>, %arg4: memref<96x64xf32, #tpu.memory_space<vmem>>, %arg5: memref<1x64xf32, #tpu.memory_space<vmem>>, %arg6: memref<192x128xf32, #tpu.memory_space<vmem>>, %arg7: memref<1x128xf32, #tpu.memory_space<vmem>>, %arg8: memref<384x256xf32, #tpu.memory_space<vmem>>, %arg9: memref<1x256xf32, #tpu.memory_space<vmem>>, %arg10: memref<256x1xf32, #tpu.memory_space<vmem>>, %arg11: memref<1x1xf32, #tpu.memory_space<vmem>>, %arg12: memref<16x1xf32, #tpu.memory_space<vmem>>) attributes {dimension_semantics = [#tpu.dimension_semantics<parallel>], iteration_bounds = array<i64: 2>, scalar_prefetch = 0 : i64, scratch_operands = 0 : i64, tpu.core_type = #tpu.core_type<tc>, window_params = [{transform_indices = @transform_0, window_bounds = array<i64: 16, 1>}, {pipeline_mode = #tpu.pipeline_mode<synchronous>, transform_indices = @transform_1, window_bounds = array<i64: 3, 32>}, {pipeline_mode = #tpu.pipeline_mode<synchronous>, transform_indices = @transform_2, window_bounds = array<i64: 1, 32>}, {pipeline_mode = #tpu.pipeline_mode<synchronous>, transform_indices = @transform_3, window_bounds = array<i64: 96, 64>}, {pipeline_mode = #tpu.pipeline_mode<synchronous>, transform_indices = @transform_4, window_bounds = array<i64: 1, 64>}, {pipeline_mode = #tpu.pipeline_mode<synchronous>, transform_indices = @transform_5, window_bounds = array<i64: 192, 128>}, {pipeline_mode = #tpu.pipeline_mode<synchronous>, transform_indices = @transform_6, window_bounds = array<i64: 1, 128>}, {pipeline_mode = #tpu.pipeline_mode<synchronous>, transform_indices = @transform_7, window_bounds = array<i64: 384, 256>}, {pipeline_mode = #tpu.pipeline_mode<synchronous>, transform_indices = @transform_8, window_bounds = array<i64: 1, 256>}, {pipeline_mode = #tpu.pipeline_mode<synchronous>, transform_indices = @transform_9, window_bounds = array<i64: 256, 1>}, {pipeline_mode = #tpu.pipeline_mode<synchronous>, transform_indices = @transform_10, window_bounds = array<i64: 1, 1>}, {transform_indices = @transform_11, window_bounds = array<i64: 16, 1>}]} {
    %0 = tpu.iota {dimensions = array<i32: 0>} : vector<16x1xi32>
    %c16_i32 = arith.constant 16 : i32
    %c0_i32 = arith.constant 0 : i32
    %1 = arith.cmpi eq, %c16_i32, %c0_i32 : i32
    %c1_i32 = arith.constant 1 : i32
    %2 = arith.select %1, %c1_i32, %c16_i32 : i32
    %3 = vector.broadcast %2 : i32 to vector<16x1xi32>
    %4 = arith.remsi %0, %3 : vector<16x1xi32>
    %c0_i32_0 = arith.constant 0 : i32
    %5 = vector.broadcast %c0_i32_0 : i32 to vector<16x1xi32>
    %6 = arith.cmpi ne, %4, %5 : vector<16x1xi32>
    %c0_i32_1 = arith.constant 0 : i32
    %7 = vector.broadcast %c0_i32_1 : i32 to vector<16x1xi32>
    %8 = arith.cmpi slt, %4, %7 : vector<16x1xi32>
    %c0_i32_2 = arith.constant 0 : i32
    %9 = arith.cmpi slt, %2, %c0_i32_2 : i32
    %10 = vector.broadcast %9 : i1 to vector<16x1xi1>
    %11 = vector.broadcast %10 : vector<16x1xi1> to vector<16x1xi1>
    %12 = arith.xori %8, %11 : vector<16x1xi1>
    %13 = arith.andi %12, %6 : vector<16x1xi1>
    %14 = vector.broadcast %2 : i32 to vector<16x1xi32>
    %15 = arith.addi %4, %14 : vector<16x1xi32>
    %16 = arith.select %13, %15, %4 : vector<16x1xi1>, vector<16x1xi32>
    %c1_i32_3 = arith.constant 1 : i32
    %17 = vector.broadcast %c1_i32_3 : i32 to vector<16x1xi32>
    %18 = arith.cmpi slt, %16, %17 : vector<16x1xi32>
    %c2_i32 = arith.constant 2 : i32
    %19 = vector.broadcast %c2_i32 : i32 to vector<16x1xi32>
    %20 = arith.cmpi slt, %16, %19 : vector<16x1xi32>
    %c4_i32 = arith.constant 4 : i32
    %21 = vector.broadcast %c4_i32 : i32 to vector<16x1xi32>
    %22 = arith.cmpi slt, %16, %21 : vector<16x1xi32>
    %c8_i32 = arith.constant 8 : i32
    %23 = vector.broadcast %c8_i32 : i32 to vector<16x1xi32>
    %24 = arith.cmpi slt, %16, %23 : vector<16x1xi32>
    %c0 = arith.constant 0 : index
    %c0_4 = arith.constant 0 : index
    %25 = vector.load %arg1[%c0, %c0_4] : memref<16x1xf32, #tpu.memory_space<vmem>>, vector<16x1xf32>
    %c0_5 = arith.constant 0 : index
    %c0_6 = arith.constant 0 : index
    %26 = vector.load %arg2[%c0_5, %c0_6] : memref<3x32xf32, #tpu.memory_space<vmem>>, vector<3x32xf32>
    %c2_i32_7 = arith.constant 2 : i32
    %27 = tpu.dynamic_rotate %25 by %c2_i32_7 dim 0 : vector<16x1xf32>, i32 -> vector<16x1xf32>
    %cst = arith.constant 0.000000e+00 : f32
    %28 = vector.broadcast %cst : f32 to vector<16x1xf32>
    %29 = arith.select %20, %28, %27 : vector<16x1xi1>, vector<16x1xf32>
    %30 = vector.extract_strided_slice %26 {offsets = [0, 0], sizes = [1, 32], strides = [1, 1]} : vector<3x32xf32> to vector<1x32xf32>
    %31 = vector.broadcast %29 : vector<16x1xf32> to vector<16x32xf32>
    %32 = vector.broadcast %30 : vector<1x32xf32> to vector<16x32xf32>
    %33 = arith.mulf %31, %32 : vector<16x32xf32>
    %c1_i32_8 = arith.constant 1 : i32
    %34 = tpu.dynamic_rotate %25 by %c1_i32_8 dim 0 : vector<16x1xf32>, i32 -> vector<16x1xf32>
    %cst_9 = arith.constant 0.000000e+00 : f32
    %35 = vector.broadcast %cst_9 : f32 to vector<16x1xf32>
    %36 = arith.select %18, %35, %34 : vector<16x1xi1>, vector<16x1xf32>
    %37 = vector.extract_strided_slice %26 {offsets = [1, 0], sizes = [1, 32], strides = [1, 1]} : vector<3x32xf32> to vector<1x32xf32>
    %38 = vector.broadcast %36 : vector<16x1xf32> to vector<16x32xf32>
    %39 = vector.broadcast %37 : vector<1x32xf32> to vector<16x32xf32>
    %40 = arith.mulf %38, %39 : vector<16x32xf32>
    %41 = arith.addf %33, %40 : vector<16x32xf32>
    %42 = vector.extract_strided_slice %26 {offsets = [2, 0], sizes = [1, 32], strides = [1, 1]} : vector<3x32xf32> to vector<1x32xf32>
    %43 = vector.broadcast %25 : vector<16x1xf32> to vector<16x32xf32>
    %44 = vector.broadcast %42 : vector<1x32xf32> to vector<16x32xf32>
    %45 = arith.mulf %43, %44 : vector<16x32xf32>
    %46 = arith.addf %41, %45 : vector<16x32xf32>
    %c0_10 = arith.constant 0 : index
    %c0_11 = arith.constant 0 : index
    %47 = vector.load %arg3[%c0_10, %c0_11] : memref<1x32xf32, #tpu.memory_space<vmem>>, vector<1x32xf32>
    %48 = vector.broadcast %47 : vector<1x32xf32> to vector<16x32xf32>
    %49 = arith.addf %46, %48 : vector<16x32xf32>
    %cst_12 = arith.constant 0.000000e+00 : f32
    %50 = vector.broadcast %cst_12 : f32 to vector<16x32xf32>
    %51 = arith.maximumf %49, %50 : vector<16x32xf32>
    %c4_i32_13 = arith.constant 4 : i32
    %52 = tpu.dynamic_rotate %51 by %c4_i32_13 dim 0 : vector<16x32xf32>, i32 -> vector<16x32xf32>
    %cst_14 = arith.constant 0.000000e+00 : f32
    %53 = vector.shape_cast %22 : vector<16x1xi1> to vector<16x1xi1>
    %54 = vector.broadcast %53 : vector<16x1xi1> to vector<16x32xi1>
    %55 = vector.broadcast %cst_14 : f32 to vector<16x32xf32>
    %56 = arith.select %54, %55, %52 : vector<16x32xi1>, vector<16x32xf32>
    %c2_i32_15 = arith.constant 2 : i32
    %57 = tpu.dynamic_rotate %51 by %c2_i32_15 dim 0 : vector<16x32xf32>, i32 -> vector<16x32xf32>
    %cst_16 = arith.constant 0.000000e+00 : f32
    %58 = vector.shape_cast %20 : vector<16x1xi1> to vector<16x1xi1>
    %59 = vector.broadcast %58 : vector<16x1xi1> to vector<16x32xi1>
    %60 = vector.broadcast %cst_16 : f32 to vector<16x32xf32>
    %61 = arith.select %59, %60, %57 : vector<16x32xi1>, vector<16x32xf32>
    %62 = tpu.concatenate %56, %61, %51 in 1 : vector<16x32xf32>, vector<16x32xf32>, vector<16x32xf32> -> vector<16x96xf32>
    %c0_17 = arith.constant 0 : index
    %c0_18 = arith.constant 0 : index
    %63 = vector.load %arg4[%c0_17, %c0_18] : memref<96x64xf32, #tpu.memory_space<vmem>>, vector<96x64xf32>
    %cst_19 = arith.constant dense<0.000000e+00> : vector<16x64xf32>
    %64 = tpu.matmul %62, %63, %cst_19 {dimension_numbers = #tpu.dot_dimension_numbers<[1], [0], [0], [1], [0, 0, 1, 1], [], []>} : vector<16x96xf32>, vector<96x64xf32>, vector<16x64xf32> -> vector<16x64xf32>
    %c0_20 = arith.constant 0 : index
    %c0_21 = arith.constant 0 : index
    %65 = vector.load %arg5[%c0_20, %c0_21] : memref<1x64xf32, #tpu.memory_space<vmem>>, vector<1x64xf32>
    %66 = vector.broadcast %65 : vector<1x64xf32> to vector<16x64xf32>
    %67 = arith.addf %64, %66 : vector<16x64xf32>
    %cst_22 = arith.constant 0.000000e+00 : f32
    %68 = vector.broadcast %cst_22 : f32 to vector<16x64xf32>
    %69 = arith.maximumf %67, %68 : vector<16x64xf32>
    %c8_i32_23 = arith.constant 8 : i32
    %70 = tpu.dynamic_rotate %69 by %c8_i32_23 dim 0 : vector<16x64xf32>, i32 -> vector<16x64xf32>
    %cst_24 = arith.constant 0.000000e+00 : f32
    %71 = vector.shape_cast %24 : vector<16x1xi1> to vector<16x1xi1>
    %72 = vector.broadcast %71 : vector<16x1xi1> to vector<16x64xi1>
    %73 = vector.broadcast %cst_24 : f32 to vector<16x64xf32>
    %74 = arith.select %72, %73, %70 : vector<16x64xi1>, vector<16x64xf32>
    %c4_i32_25 = arith.constant 4 : i32
    %75 = tpu.dynamic_rotate %69 by %c4_i32_25 dim 0 : vector<16x64xf32>, i32 -> vector<16x64xf32>
    %cst_26 = arith.constant 0.000000e+00 : f32
    %76 = vector.shape_cast %22 : vector<16x1xi1> to vector<16x1xi1>
    %77 = vector.broadcast %76 : vector<16x1xi1> to vector<16x64xi1>
    %78 = vector.broadcast %cst_26 : f32 to vector<16x64xf32>
    %79 = arith.select %77, %78, %75 : vector<16x64xi1>, vector<16x64xf32>
    %80 = tpu.concatenate %74, %79, %69 in 1 : vector<16x64xf32>, vector<16x64xf32>, vector<16x64xf32> -> vector<16x192xf32>
    %c0_27 = arith.constant 0 : index
    %c0_28 = arith.constant 0 : index
    %81 = vector.load %arg6[%c0_27, %c0_28] : memref<192x128xf32, #tpu.memory_space<vmem>>, vector<192x128xf32>
    %cst_29 = arith.constant dense<0.000000e+00> : vector<16x128xf32>
    %82 = tpu.matmul %80, %81, %cst_29 {dimension_numbers = #tpu.dot_dimension_numbers<[1], [0], [0], [1], [0, 0, 1, 1], [], []>} : vector<16x192xf32>, vector<192x128xf32>, vector<16x128xf32> -> vector<16x128xf32>
    %c0_30 = arith.constant 0 : index
    %c0_31 = arith.constant 0 : index
    %83 = vector.load %arg7[%c0_30, %c0_31] : memref<1x128xf32, #tpu.memory_space<vmem>>, vector<1x128xf32>
    %84 = vector.broadcast %83 : vector<1x128xf32> to vector<16x128xf32>
    %85 = arith.addf %82, %84 : vector<16x128xf32>
    %cst_32 = arith.constant 0.000000e+00 : f32
    %86 = vector.broadcast %cst_32 : f32 to vector<16x128xf32>
    %87 = arith.maximumf %85, %86 : vector<16x128xf32>
    %cst_33 = arith.constant 0.000000e+00 : f32
    %88 = vector.broadcast %cst_33 : f32 to vector<16x128xf32>
    %c8_i32_34 = arith.constant 8 : i32
    %89 = tpu.dynamic_rotate %87 by %c8_i32_34 dim 0 : vector<16x128xf32>, i32 -> vector<16x128xf32>
    %cst_35 = arith.constant 0.000000e+00 : f32
    %90 = vector.shape_cast %24 : vector<16x1xi1> to vector<16x1xi1>
    %91 = vector.broadcast %90 : vector<16x1xi1> to vector<16x128xi1>
    %92 = vector.broadcast %cst_35 : f32 to vector<16x128xf32>
    %93 = arith.select %91, %92, %89 : vector<16x128xi1>, vector<16x128xf32>
    %94 = tpu.concatenate %88, %93, %87 in 1 : vector<16x128xf32>, vector<16x128xf32>, vector<16x128xf32> -> vector<16x384xf32>
    %c0_36 = arith.constant 0 : index
    %c0_37 = arith.constant 0 : index
    %95 = vector.load %arg8[%c0_36, %c0_37] : memref<384x256xf32, #tpu.memory_space<vmem>>, vector<384x256xf32>
    %cst_38 = arith.constant dense<0.000000e+00> : vector<16x256xf32>
    %96 = tpu.matmul %94, %95, %cst_38 {dimension_numbers = #tpu.dot_dimension_numbers<[1], [0], [0], [1], [0, 0, 1, 1], [], []>} : vector<16x384xf32>, vector<384x256xf32>, vector<16x256xf32> -> vector<16x256xf32>
    %c0_39 = arith.constant 0 : index
    %c0_40 = arith.constant 0 : index
    %97 = vector.load %arg9[%c0_39, %c0_40] : memref<1x256xf32, #tpu.memory_space<vmem>>, vector<1x256xf32>
    %98 = vector.broadcast %97 : vector<1x256xf32> to vector<16x256xf32>
    %99 = arith.addf %96, %98 : vector<16x256xf32>
    %cst_41 = arith.constant 0.000000e+00 : f32
    %100 = vector.broadcast %cst_41 : f32 to vector<16x256xf32>
    %101 = arith.maximumf %99, %100 : vector<16x256xf32>
    %c0_42 = arith.constant 0 : index
    %c0_43 = arith.constant 0 : index
    %102 = vector.load %arg10[%c0_42, %c0_43] : memref<256x1xf32, #tpu.memory_space<vmem>>, vector<256x1xf32>
    %cst_44 = arith.constant dense<0.000000e+00> : vector<16x1xf32>
    %103 = tpu.matmul %101, %102, %cst_44 {dimension_numbers = #tpu.dot_dimension_numbers<[1], [0], [0], [1], [0, 0, 1, 1], [], []>} : vector<16x256xf32>, vector<256x1xf32>, vector<16x1xf32> -> vector<16x1xf32>
    %c0_45 = arith.constant 0 : index
    %c0_46 = arith.constant 0 : index
    %104 = vector.load %arg11[%c0_45, %c0_46] : memref<1x1xf32, #tpu.memory_space<vmem>>, vector<1x1xf32>
    %105 = vector.broadcast %104 : vector<1x1xf32> to vector<16x1xf32>
    %106 = arith.addf %103, %105 : vector<16x1xf32>
    %c0_47 = arith.constant 0 : index
    %c0_48 = arith.constant 0 : index
    %107 = vector.load %arg12[%c0_47, %c0_48] : memref<16x1xf32, #tpu.memory_space<vmem>>, vector<16x1xf32>
    tpu.vector_store %arg12[%c0_47, %c0_48], %106 {strides = array<i32>} : memref<16x1xf32, #tpu.memory_space<vmem>>, vector<16x1xf32>,
    return
  }
  func.func @transform_0(%arg0: i32) -> (i32, i32) {
    %c0_i32 = arith.constant 0 : i32
    %c0_i32_0 = arith.constant 0 : i32
    return %arg0, %c0_i32 : i32, i32
  }
  func.func @transform_1(%arg0: i32) -> (i32, i32) {
    %c0_i32 = arith.constant 0 : i32
    %c0_i32_0 = arith.constant 0 : i32
    %c0_i32_1 = arith.constant 0 : i32
    return %c0_i32, %c0_i32_0 : i32, i32
  }
  func.func @transform_2(%arg0: i32) -> (i32, i32) {
    %c0_i32 = arith.constant 0 : i32
    %c0_i32_0 = arith.constant 0 : i32
    %c0_i32_1 = arith.constant 0 : i32
    return %c0_i32, %c0_i32_0 : i32, i32
  }
  func.func @transform_3(%arg0: i32) -> (i32, i32) {
    %c0_i32 = arith.constant 0 : i32
    %c0_i32_0 = arith.constant 0 : i32
    %c0_i32_1 = arith.constant 0 : i32
    return %c0_i32, %c0_i32_0 : i32, i32
  }
  func.func @transform_4(%arg0: i32) -> (i32, i32) {
    %c0_i32 = arith.constant 0 : i32
    %c0_i32_0 = arith.constant 0 : i32
    %c0_i32_1 = arith.constant 0 : i32
    return %c0_i32, %c0_i32_0 : i32, i32
  }
  func.func @transform_5(%arg0: i32) -> (i32, i32) {
    %c0_i32 = arith.constant 0 : i32
    %c0_i32_0 = arith.constant 0 : i32
    %c0_i32_1 = arith.constant 0 : i32
    return %c0_i32, %c0_i32_0 : i32, i32
  }
  func.func @transform_6(%arg0: i32) -> (i32, i32) {
    %c0_i32 = arith.constant 0 : i32
    %c0_i32_0 = arith.constant 0 : i32
    %c0_i32_1 = arith.constant 0 : i32
    return %c0_i32, %c0_i32_0 : i32, i32
  }
  func.func @transform_7(%arg0: i32) -> (i32, i32) {
    %c0_i32 = arith.constant 0 : i32
    %c0_i32_0 = arith.constant 0 : i32
    %c0_i32_1 = arith.constant 0 : i32
    return %c0_i32, %c0_i32_0 : i32, i32
  }
  func.func @transform_8(%arg0: i32) -> (i32, i32) {
    %c0_i32 = arith.constant 0 : i32
    %c0_i32_0 = arith.constant 0 : i32
    %c0_i32_1 = arith.constant 0 : i32
    return %c0_i32, %c0_i32_0 : i32, i32
  }
  func.func @transform_9(%arg0: i32) -> (i32, i32) {
    %c0_i32 = arith.constant 0 : i32
    %c0_i32_0 = arith.constant 0 : i32
    %c0_i32_1 = arith.constant 0 : i32
    return %c0_i32, %c0_i32_0 : i32, i32
  }
  func.func @transform_10(%arg0: i32) -> (i32, i32) {
    %c0_i32 = arith.constant 0 : i32
    %c0_i32_0 = arith.constant 0 : i32
    %c0_i32_1 = arith.constant 0 : i32
    return %c0_i32, %c0_i32_0 : i32, i32
  }
  func.func @transform_11(%arg0: i32) -> (i32, i32) {
    %c0_i32 = arith.constant 0 : i32
    %c0_i32_0 = arith.constant 0 : i32
    return %arg0, %c0_i32 : i32, i32
  }
}

</mosaic_0001>

<llo_original>
// kernel: tpu_custom_call.1
$region0: #{tpu_custom_call.1}
  #allocation0 [shape = 'u32[]', space=smem, size = 0x4, offset = 0x4, fixed_abs, tag = 'smem constant byte address 0x4 - core index']
  #allocation1 [shape = 'u32[72,128]{1,0:T(1,128)}', space=vmem, size = 0x9000, scoped, tag = 'internal scratch']
  #allocation2 [shape = 'f32[1,1]{1,0:T(1,128)S(1)}', space=vmem, size = 0x200, scoped, tag = 'scoped memory for tpu_custom_call.1']
  %s0 = inlined_call_operand.vmem [shape: f32[32,1], index: 0, kind: input, shape index: {}]
  %s1 = inlined_call_operand.vmem [shape: f32[3,32], index: 1, kind: input, shape index: {}]
  %s2 = inlined_call_operand.vmem [shape: f32[1,32], index: 2, kind: input, shape index: {}]
  %s3 = inlined_call_operand.vmem [shape: f32[96,64], index: 3, kind: input, shape index: {}]
  %s4 = inlined_call_operand.vmem [shape: f32[1,64], index: 4, kind: input, shape index: {}]
  %s5 = inlined_call_operand.vmem [shape: f32[192,128], index: 5, kind: input, shape index: {}]
  %s6 = inlined_call_operand.vmem [shape: f32[1,128], index: 6, kind: input, shape index: {}]
  %s7 = inlined_call_operand.hbm [shape: f32[384,256], index: 7, kind: input, shape index: {}]
  %s8 = inlined_call_operand.vmem [shape: f32[1,256], index: 8, kind: input, shape index: {}]
  %s9 = inlined_call_operand.vmem [shape: f32[256,1], index: 9, kind: input, shape index: {}]
  %s10 = inlined_call_operand.<no memory space> [shape: f32[1,1], index: 10, kind: input, shape index: {}]
  %s11 = inlined_call_operand.vmem [shape: f32[32,1], index: 11, kind: output, shape index: {}]
  %s12 = sld [smem:[#allocation0]]
  $region81: #{tpu_custom_call.1} parent=0
    _
  %s14 = ssub.s32 1, %s12
  %s15 = scalar_select 0, %s14, %s12
  %v16 = vstv %s10
  %17 = vst [vmem:[#allocation2] sm:$0x1] %v16
  $region1: #{tpu_custom_call.1} parent=0
    #allocation3 [shape = 'u8[393216]{0}', space=vmem, size = 0x60000, scoped, tag = 'input window, operand 7, single buffered']
    #allocation4 [shape = 's32[2]{0}', space=sflag, size = 0x8, scoped, tag = 'scoped memory for tpu_custom_call.1']
    %18 = vsyncpa [#allocation4], 0
    loop: start=0, step=1, limit=4
    $region2: #{tpu_custom_call.1} parent=1 // loop_pre_header
      _
    $region3: #{tpu_custom_call.1} parent=1 // loop_header
      %s20 = sphi 0, %s24
      %p21 = scmp.ge.s32.totalorder %s20, 4
      %s30 = sphi 0, %s32
      %s33 = sphi 0, %s30
      %s34 = sphi 0, %s33
      %s50 = sphi 0, %s34
      %s54 = sphi 0, %s54
      %s56 = sphi 0, %s54
      %s57 = sphi 0, %s56
      %s71 = sphi 0, %s57
      %s75 = sphi 0, %s75
      %s77 = sphi 0, %s75
      %s78 = sphi 0, %s77
      %s92 = sphi 0, %s78
      %s96 = sphi 0, %s96
      %s98 = sphi 0, %s96
      %s99 = sphi 0, %s98
      %s113 = sphi 0, %s99
      %s117 = sphi 0, %s117
      %s119 = sphi 0, %s117
      %s120 = sphi 0, %s119
      %s134 = sphi 0, %s120
      %s138 = sphi 0, %s138
      %s140 = sphi 0, %s138
      %s141 = sphi 0, %s140
      %s155 = sphi 0, %s141
      %s159 = sphi 0, %s159
      %s161 = sphi 0, %s159
      %s162 = sphi 0, %s161
      %s176 = sphi 0, %s162
      %s180 = sphi 0, %s180
      %s182 = sphi 0, %s180
      %s183 = sphi 0, %s182
      %s197 = sphi 0, %s183
      %s201 = sphi 0, %s201
      %s203 = sphi 0, %s201
      %s204 = sphi 0, %s203
      %s218 = sphi 0, %s204
      %s222 = sphi 0, %s222
      %s224 = sphi 0, %s222
      %s225 = sphi 0, %s224
      %s239 = sphi 0, %s225
      %s243 = sphi 0, %s243
      %s245 = sphi 0, %s243
      %s246 = sphi 0, %s245
      %s260 = sphi 0, %s246
      %s266 = sphi 0, %s268
      %s269 = sphi 0, %s266
      %s270 = sphi 0, %s269
      %s286 = sphi 0, %s270
    $region4: #{tpu_custom_call.1} parent=1 // loop_header_branch
      %23 = sbr.rel (%p21) target = $region8
    $region5: #{tpu_custom_call.1} parent=1 // loop_body
      %s25 = ssub.s32 %s20, 1
      %s26 = ssub.s32 %s20, 2
      %s27 = sadd.s32 %s20, 1
      %s28 = ssub.s32 %s20, %s27
      %p29 = scmp.eq.s32.totalorder %s28, 0
      %s31 = sadd.s32 %s30, 1
      %s32 = scalar_select %p29, %s30, %s31
      %p35 = pneg %p29
      %p36 = scmp.eq.s32.totalorder %s20, 1
      %p37 = por %p35, %p36
      %p38 = scmp.ne.s32.totalorder %s30, %s33
      %p39 = scmp.eq.s32.totalorder %s20, 0
      %p40 = por %p38, %p39
      %p41 = scmp.ne.s32.totalorder %s30, %s33
      %p42 = scmp.eq.s32.totalorder %s25, 1
      %p43 = por %p41, %p42
      %p44 = scmp.ne.s32.totalorder %s33, %s34
      %p45 = scmp.eq.s32.totalorder %s25, 0
      %p46 = por %p44, %p45
      %p47 = scmp.ne.s32.totalorder %s33, %s34
      %p48 = scmp.eq.s32.totalorder %s26, 1
      %p49 = por %p47, %p48
      %p51 = scmp.ne.s32.totalorder %s34, %s50
      %p52 = scmp.eq.s32.totalorder %s26, 0
      %p53 = por %p51, %p52
      %s55 = sadd.s32 %s54, 1
      %p58 = scmp.eq.s32.totalorder %s20, 1
      %p59 = scmp.ne.s32.totalorder %s54, %s56
      %p60 = scmp.eq.s32.totalorder %s20, 0
      %p61 = por %p59, %p60
      %p62 = scmp.ne.s32.totalorder %s54, %s56
      %p63 = scmp.eq.s32.totalorder %s25, 1
      %p64 = por %p62, %p63
      %p65 = scmp.ne.s32.totalorder %s56, %s57
      %p66 = scmp.eq.s32.totalorder %s25, 0
      %p67 = por %p65, %p66
      %p68 = scmp.ne.s32.totalorder %s56, %s57
      %p69 = scmp.eq.s32.totalorder %s26, 1
      %p70 = por %p68, %p69
      %p72 = scmp.ne.s32.totalorder %s57, %s71
      %p73 = scmp.eq.s32.totalorder %s26, 0
      %p74 = por %p72, %p73
      %s76 = sadd.s32 %s75, 1
      %p79 = scmp.eq.s32.totalorder %s20, 1
      %p80 = scmp.ne.s32.totalorder %s75, %s77
      %p81 = scmp.eq.s32.totalorder %s20, 0
      %p82 = por %p80, %p81
      %p83 = scmp.ne.s32.totalorder %s75, %s77
      %p84 = scmp.eq.s32.totalorder %s25, 1
      %p85 = por %p83, %p84
      %p86 = scmp.ne.s32.totalorder %s77, %s78
      %p87 = scmp.eq.s32.totalorder %s25, 0
      %p88 = por %p86, %p87
      %p89 = scmp.ne.s32.totalorder %s77, %s78
      %p90 = scmp.eq.s32.totalorder %s26, 1
      %p91 = por %p89, %p90
      %p93 = scmp.ne.s32.totalorder %s78, %s92
      %p94 = scmp.eq.s32.totalorder %s26, 0
      %p95 = por %p93, %p94
      %s97 = sadd.s32 %s96, 1
      %p100 = scmp.eq.s32.totalorder %s20, 1
      %p101 = scmp.ne.s32.totalorder %s96, %s98
      %p102 = scmp.eq.s32.totalorder %s20, 0
      %p103 = por %p101, %p102
      %p104 = scmp.ne.s32.totalorder %s96, %s98
      %p105 = scmp.eq.s32.totalorder %s25, 1
      %p106 = por %p104, %p105
      %p107 = scmp.ne.s32.totalorder %s98, %s99
      %p108 = scmp.eq.s32.totalorder %s25, 0
      %p109 = por %p107, %p108
      %p110 = scmp.ne.s32.totalorder %s98, %s99
      %p111 = scmp.eq.s32.totalorder %s26, 1
      %p112 = por %p110, %p111
      %p114 = scmp.ne.s32.totalorder %s99, %s113
      %p115 = scmp.eq.s32.totalorder %s26, 0
      %p116 = por %p114, %p115
      %s118 = sadd.s32 %s117, 1
      %p121 = scmp.eq.s32.totalorder %s20, 1
      %p122 = scmp.ne.s32.totalorder %s117, %s119
      %p123 = scmp.eq.s32.totalorder %s20, 0
      %p124 = por %p122, %p123
      %p125 = scmp.ne.s32.totalorder %s117, %s119
      %p126 = scmp.eq.s32.totalorder %s25, 1
      %p127 = por %p125, %p126
      %p128 = scmp.ne.s32.totalorder %s119, %s120
      %p129 = scmp.eq.s32.totalorder %s25, 0
      %p130 = por %p128, %p129
      %p131 = scmp.ne.s32.totalorder %s119, %s120
      %p132 = scmp.eq.s32.totalorder %s26, 1
      %p133 = por %p131, %p132
      %p135 = scmp.ne.s32.totalorder %s120, %s134
      %p136 = scmp.eq.s32.totalorder %s26, 0
      %p137 = por %p135, %p136
      %s139 = sadd.s32 %s138, 1
      %p142 = scmp.eq.s32.totalorder %s20, 1
      %p143 = scmp.ne.s32.totalorder %s138, %s140
      %p144 = scmp.eq.s32.totalorder %s20, 0
      %p145 = por %p143, %p144
      %p146 = scmp.ne.s32.totalorder %s138, %s140
      %p147 = scmp.eq.s32.totalorder %s25, 1
      %p148 = por %p146, %p147
      %p149 = scmp.ne.s32.totalorder %s140, %s141
      %p150 = scmp.eq.s32.totalorder %s25, 0
      %p151 = por %p149, %p150
      %p152 = scmp.ne.s32.totalorder %s140, %s141
      %p153 = scmp.eq.s32.totalorder %s26, 1
      %p154 = por %p152, %p153
      %p156 = scmp.ne.s32.totalorder %s141, %s155
      %p157 = scmp.eq.s32.totalorder %s26, 0
      %p158 = por %p156, %p157
      %s160 = sadd.s32 %s159, 1
      %p163 = scmp.eq.s32.totalorder %s20, 1
      %p164 = scmp.ne.s32.totalorder %s159, %s161
      %p165 = scmp.eq.s32.totalorder %s20, 0
      %p166 = por %p164, %p165
      %p167 = scmp.ne.s32.totalorder %s159, %s161
      %p168 = scmp.eq.s32.totalorder %s25, 1
      %p169 = por %p167, %p168
      %p170 = scmp.ne.s32.totalorder %s161, %s162
      %p171 = scmp.eq.s32.totalorder %s25, 0
      %p172 = por %p170, %p171
      %p173 = scmp.ne.s32.totalorder %s161, %s162
      %p174 = scmp.eq.s32.totalorder %s26, 1
      %p175 = por %p173, %p174
      %p177 = scmp.ne.s32.totalorder %s162, %s176
      %p178 = scmp.eq.s32.totalorder %s26, 0
      %p179 = por %p177, %p178
      %s181 = sadd.s32 %s180, 1
      %p184 = scmp.eq.s32.totalorder %s20, 1
      %p185 = scmp.ne.s32.totalorder %s180, %s182
      %p186 = scmp.eq.s32.totalorder %s20, 0
      %p187 = por %p185, %p186
      %p188 = scmp.ne.s32.totalorder %s180, %s182
      %p189 = scmp.eq.s32.totalorder %s25, 1
      %p190 = por %p188, %p189
      %p191 = scmp.ne.s32.totalorder %s182, %s183
      %p192 = scmp.eq.s32.totalorder %s25, 0
      %p193 = por %p191, %p192
      %p194 = scmp.ne.s32.totalorder %s182, %s183
      %p195 = scmp.eq.s32.totalorder %s26, 1
      %p196 = por %p194, %p195
      %p198 = scmp.ne.s32.totalorder %s183, %s197
      %p199 = scmp.eq.s32.totalorder %s26, 0
      %p200 = por %p198, %p199
      %s202 = sadd.s32 %s201, 1
      %p205 = scmp.eq.s32.totalorder %s20, 1
      %p206 = scmp.ne.s32.totalorder %s201, %s203
      %p207 = scmp.eq.s32.totalorder %s20, 0
      %p208 = por %p206, %p207
      %p209 = scmp.ne.s32.totalorder %s201, %s203
      %p210 = scmp.eq.s32.totalorder %s25, 1
      %p211 = por %p209, %p210
      %p212 = scmp.ne.s32.totalorder %s203, %s204
      %p213 = scmp.eq.s32.totalorder %s25, 0
      %p214 = por %p212, %p213
      %p215 = scmp.ne.s32.totalorder %s203, %s204
      %p216 = scmp.eq.s32.totalorder %s26, 1
      %p217 = por %p215, %p216
      %p219 = scmp.ne.s32.totalorder %s204, %s218
      %p220 = scmp.eq.s32.totalorder %s26, 0
      %p221 = por %p219, %p220
      %s223 = sadd.s32 %s222, 1
      %p226 = scmp.eq.s32.totalorder %s20, 1
      %p227 = scmp.ne.s32.totalorder %s222, %s224
      %p228 = scmp.eq.s32.totalorder %s20, 0
      %p229 = por %p227, %p228
      %p230 = scmp.ne.s32.totalorder %s222, %s224
      %p231 = scmp.eq.s32.totalorder %s25, 1
      %p232 = por %p230, %p231
      %p233 = scmp.ne.s32.totalorder %s224, %s225
      %p234 = scmp.eq.s32.totalorder %s25, 0
      %p235 = por %p233, %p234
      %p236 = scmp.ne.s32.totalorder %s224, %s225
      %p237 = scmp.eq.s32.totalorder %s26, 1
      %p238 = por %p236, %p237
      %p240 = scmp.ne.s32.totalorder %s225, %s239
      %p241 = scmp.eq.s32.totalorder %s26, 0
      %p242 = por %p240, %p241
      %s244 = sadd.s32 %s243, 1
      %p247 = scmp.eq.s32.totalorder %s20, 1
      %p248 = scmp.ne.s32.totalorder %s243, %s245
      %p249 = scmp.eq.s32.totalorder %s20, 0
      %p250 = por %p248, %p249
      %p251 = scmp.ne.s32.totalorder %s243, %s245
      %p252 = scmp.eq.s32.totalorder %s25, 1
      %p253 = por %p251, %p252
      %p254 = scmp.ne.s32.totalorder %s245, %s246
      %p255 = scmp.eq.s32.totalorder %s25, 0
      %p256 = por %p254, %p255
      %p257 = scmp.ne.s32.totalorder %s245, %s246
      %p258 = scmp.eq.s32.totalorder %s26, 1
      %p259 = por %p257, %p258
      %p261 = scmp.ne.s32.totalorder %s246, %s260
      %p262 = scmp.eq.s32.totalorder %s26, 0
      %p263 = por %p261, %p262
      %s264 = ssub.s32 %s20, %s27
      %p265 = scmp.eq.s32.totalorder %s264, 0
      %s267 = sadd.s32 %s266, 1
      %s268 = scalar_select %p265, %s266, %s267
      %p271 = pneg %p265
      %p272 = scmp.eq.s32.totalorder %s20, 1
      %p273 = por %p271, %p272
      %p274 = scmp.ne.s32.totalorder %s266, %s269
      %p275 = scmp.eq.s32.totalorder %s20, 0
      %p276 = por %p274, %p275
      %p277 = scmp.ne.s32.totalorder %s266, %s269
      %p278 = scmp.eq.s32.totalorder %s25, 1
      %p279 = por %p277, %p278
      %p280 = scmp.ne.s32.totalorder %s269, %s270
      %p281 = scmp.eq.s32.totalorder %s25, 0
      %p282 = por %p280, %p281
      %p283 = scmp.ne.s32.totalorder %s269, %s270
      %p284 = scmp.eq.s32.totalorder %s26, 1
      %p285 = por %p283, %p284
      %p287 = scmp.ne.s32.totalorder %s270, %s286
      %p288 = scmp.eq.s32.totalorder %s26, 0
      %p289 = por %p287, %p288
      %p290 = scmp.le.s32.totalorder 1, %s20
      %p291 = scmp.lt.s32.totalorder %s20, 3
      %p292 = pnand %p290, %p291
      %p293 = pneg %p292
      // Predicated region
      $region9: #{tpu_custom_call.1} parent=5 // pred_check
        _
      $region10: #{tpu_custom_call.1} parent=5 // pred_check_branch
        %295 = sbr.rel (%p292) target = $region12
      $region11: #{tpu_custom_call.1} parent=5 // pred_region
        %s296 = ssub.s32 %s20, 1
        // Predicated region
        $region13: #{tpu_custom_call.1} parent=11 // pred_check
          %p297 = pneg %p67
        $region14: #{tpu_custom_call.1} parent=11 // pred_check_branch
          %299 = sbr.rel (%p297) target = $region16
        $region15: #{tpu_custom_call.1} parent=11 // pred_region
          _
        $region16: #{tpu_custom_call.1} parent=11 // pred_fallthru
          _
        // Predicated region
        $region17: #{tpu_custom_call.1} parent=11 // pred_check
          %p300 = pneg %p88
        $region18: #{tpu_custom_call.1} parent=11 // pred_check_branch
          %302 = sbr.rel (%p300) target = $region20
        $region19: #{tpu_custom_call.1} parent=11 // pred_region
          _
        $region20: #{tpu_custom_call.1} parent=11 // pred_fallthru
          _
        // Predicated region
        $region21: #{tpu_custom_call.1} parent=11 // pred_check
          %p303 = pneg %p109
        $region22: #{tpu_custom_call.1} parent=11 // pred_check_branch
          %305 = sbr.rel (%p303) target = $region24
        $region23: #{tpu_custom_call.1} parent=11 // pred_region
          _
        $region24: #{tpu_custom_call.1} parent=11 // pred_fallthru
          _
        // Predicated region
        $region25: #{tpu_custom_call.1} parent=11 // pred_check
          %p306 = pneg %p130
        $region26: #{tpu_custom_call.1} parent=11 // pred_check_branch
          %308 = sbr.rel (%p306) target = $region28
        $region27: #{tpu_custom_call.1} parent=11 // pred_region
          _
        $region28: #{tpu_custom_call.1} parent=11 // pred_fallthru
          _
        // Predicated region
        $region29: #{tpu_custom_call.1} parent=11 // pred_check
          %p309 = pneg %p151
        $region30: #{tpu_custom_call.1} parent=11 // pred_check_branch
          %311 = sbr.rel (%p309) target = $region32
        $region31: #{tpu_custom_call.1} parent=11 // pred_region
          _
        $region32: #{tpu_custom_call.1} parent=11 // pred_fallthru
          _
        // Predicated region
        $region33: #{tpu_custom_call.1} parent=11 // pred_check
          %p312 = pneg %p172
        $region34: #{tpu_custom_call.1} parent=11 // pred_check_branch
          %314 = sbr.rel (%p312) target = $region36
        $region35: #{tpu_custom_call.1} parent=11 // pred_region
          _
        $region36: #{tpu_custom_call.1} parent=11 // pred_fallthru
          _
        // Predicated region
        $region37: #{tpu_custom_call.1} parent=11 // pred_check
          %p315 = pneg %p193
        $region38: #{tpu_custom_call.1} parent=11 // pred_check_branch
          %317 = sbr.rel (%p315) target = $region40
        $region39: #{tpu_custom_call.1} parent=11 // pred_region
          %319 = vsyncadd [#allocation4], 0
          %s320 = sshll.u32 %s7, 4
          %s321 = int_to_ptr.hbm [resolvable:$true] %s320
          %s322 = sshll.u32 [#allocation3], 4
          %s323 = int_to_ptr.vmem [resolvable:$true] %s322
          %328 = dma.hbm_to_vmem [thread:$0]  %s321, 12288, %s323, [#allocation4], 256, 256, 16
        $region40: #{tpu_custom_call.1} parent=11 // pred_fallthru
          _
        // Predicated region
        $region41: #{tpu_custom_call.1} parent=11 // pred_check
          %p329 = pneg %p214
        $region42: #{tpu_custom_call.1} parent=11 // pred_check_branch
          %331 = sbr.rel (%p329) target = $region44
        $region43: #{tpu_custom_call.1} parent=11 // pred_region
          _
        $region44: #{tpu_custom_call.1} parent=11 // pred_fallthru
          _
        // Predicated region
        $region45: #{tpu_custom_call.1} parent=11 // pred_check
          %p332 = pneg %p235
        $region46: #{tpu_custom_call.1} parent=11 // pred_check_branch
          %334 = sbr.rel (%p332) target = $region48
        $region47: #{tpu_custom_call.1} parent=11 // pred_region
          _
        $region48: #{tpu_custom_call.1} parent=11 // pred_fallthru
          _
        // Predicated region
        $region49: #{tpu_custom_call.1} parent=11 // pred_check
          %p335 = pneg %p256
        $region50: #{tpu_custom_call.1} parent=11 // pred_check_branch
          %337 = sbr.rel (%p335) target = $region52
        $region51: #{tpu_custom_call.1} parent=11 // pred_region
          _
        $region52: #{tpu_custom_call.1} parent=11 // pred_fallthru
          _
      $region12: #{tpu_custom_call.1} parent=5 // pred_fallthru
        _
      %p338 = scmp.lt.s32.totalorder %s20, 2
      // Predicated region
      $region53: #{tpu_custom_call.1} parent=5 // pred_check
        %p339 = pneg %p338
      $region54: #{tpu_custom_call.1} parent=5 // pred_check_branch
        %341 = sbr.rel (%p339) target = $region56
      $region55: #{tpu_custom_call.1} parent=5 // pred_region
        // Predicated region
        $region57: #{tpu_custom_call.1} parent=55 // pred_check
          %p342 = pneg %p40
        $region58: #{tpu_custom_call.1} parent=55 // pred_check_branch
          %344 = sbr.rel (%p342) target = $region60
        $region59: #{tpu_custom_call.1} parent=55 // pred_region
          %s345 = smul.u32 2, %s20
          %p346 = scmp.lt.s32.totalorder %s345, 3
          %s347 = scalar_select %p346, %s345, 3
          %s348 = smul.addr %s347, 8
          %s349 = scalar_lea.vmem %s0, %s348
          %s350 = smul.u32 2, %s20
        $region60: #{tpu_custom_call.1} parent=55 // pred_fallthru
          _
      $region56: #{tpu_custom_call.1} parent=5 // pred_fallthru
        _
      %p351 = scmp.le.s32.totalorder 1, %s20
      %p352 = scmp.lt.s32.totalorder %s20, 3
      %p353 = pnand %p351, %p352
      %p354 = pneg %p353
      // Predicated region
      $region61: #{tpu_custom_call.1} parent=5 // pred_check
        _
      $region62: #{tpu_custom_call.1} parent=5 // pred_check_branch
        %356 = sbr.rel (%p353) target = $region64
      $region63: #{tpu_custom_call.1} parent=5 // pred_region
        %s357 = ssub.s32 %s20, 1
        // Predicated region
        $region65: #{tpu_custom_call.1} parent=63 // pred_check
          %p358 = pneg %p193
        $region66: #{tpu_custom_call.1} parent=63 // pred_check_branch
          %360 = sbr.rel (%p358) target = $region68
        $region67: #{tpu_custom_call.1} parent=63 // pred_region
          %362 = dma.done [#allocation4], 12288
        $region68: #{tpu_custom_call.1} parent=63 // pred_fallthru
          _
        %s363 = smul.u32 2, %s25
        %p364 = scmp.lt.s32.totalorder %s363, 3
        %s365 = scalar_select %p364, %s363, 3
        %s366 = smul.addr %s365, 8
        %s367 = scalar_lea.vmem %s0, %s366
        %p368 = pneg %p46
        %p369 = pneg %p43
        %p370 = pneg %p67
        %p371 = pneg %p64
        %p372 = pneg %p88
        %p373 = pneg %p85
        %p374 = pneg %p109
        %p375 = pneg %p106
        %p376 = pneg %p130
        %p377 = pneg %p127
        %p378 = pneg %p151
        %p379 = pneg %p148
        %p380 = pneg %p172
        %p381 = pneg %p169
        %p382 = pneg %p193
        %p383 = pneg %p190
        %p384 = pneg %p214
        %p385 = pneg %p211
        %p386 = pneg %p235
        %p387 = pneg %p232
        %p388 = pneg %p256
        %p389 = pneg %p253
        %p390 = pneg %p282
        %p391 = pneg %p279
        %s392 = smul.u32 2, %s25
        %p393 = scmp.lt.s32.totalorder %s392, 3
        %s394 = scalar_select %p393, %s392, 3
        %s395 = smul.addr %s394, 8
        %s396 = scalar_lea.vmem %s11, %s395
        %s397 = smul.u32 2, %s25
        %p398 = scmp.lt.s32.totalorder %s397, 3
        %s399 = scalar_select %p398, %s397, 3
        %s400 = smul.addr %s399, 8
        %s401 = scalar_lea.vmem %s0, %s400
        %s402 = smul.u32 2, %s25
        %s403 = smul.u32 2, %s25
        %p404 = scmp.lt.s32.totalorder %s403, 3
        %s405 = scalar_select %p404, %s403, 3
        %s406 = smul.addr %s405, 8
        %s407 = scalar_lea.vmem %s11, %s406
        %s408 = smul.u32 2, %s25
        %v409 = vlaneseq
        %v410 = vshrl.u32 %v409, 7
        %v411 = vadd.s32 %v410, 8
        %vm412 = vcmp.lt.s32.totalorder %v410, 0
        %v413 = vsub.s32 0, %v410
        %v414 = vsel %vm412, %v413, %v410
        %v415 = vshrl.u32 %v414, 4
        %v416 = vand.u32 %v414, 15
        %v417 = vsub.s32 0, %v416
        %v418 = vsel %vm412, %v417, %v416
        %vm419 = vcmp.lt.s32.totalorder %v411, 0
        %v420 = vsub.s32 0, %v411
        %v421 = vsel %vm419, %v420, %v411
        %v422 = vshrl.u32 %v421, 4
        %v423 = vand.u32 %v421, 15
        %v424 = vsub.s32 0, %v423
        %v425 = vsel %vm419, %v424, %v423
        %vm426 = vcmp.ne.s32.totalorder %v418, 0
        %vm427 = vcmp.ne.s32.totalorder %v425, 0
        %vm428 = vcmp.lt.s32.totalorder %v418, 0
        %vm429 = vcmp.lt.s32.totalorder %v425, 0
        %vm430 = vmand %vm428, %vm426
        %vm431 = vmand %vm429, %vm427
        %v432 = vadd.s32 %v418, 16
        %v433 = vadd.s32 %v425, 16
        %v434 = vsel %vm430, %v432, %v418
        %v435 = vsel %vm431, %v433, %v425
        %vm436 = vcmp.lt.s32.totalorder %v434, 1
        %vm437 = vcmp.lt.s32.totalorder %v435, 1
        %vm438 = vcmp.lt.s32.totalorder %v434, 2
        %vm439 = vcmp.lt.s32.totalorder %v435, 2
        %vm440 = vcmp.lt.s32.totalorder %v434, 4
        %vm441 = vcmp.lt.s32.totalorder %v435, 4
        %vm442 = vcmp.lt.s32.totalorder %v434, 8
        %vm443 = vcmp.lt.s32.totalorder %v435, 8
        %v444 = vld [vmem:[%s401] sm:$0xff]
        %v445 = vld [vmem:[%s401 + $0x8] sm:$0xff]
        %v446 = vld [vmem:[%s1] sm:$0x7]
        %v447 = vrot.slane %v444, 6
        %v448 = vrot.slane %v445, 6
        %vm449 = vcmp.lt.s32.totalorder %v410, 2
        %v450 = vsel %vm449, %v447, %v448
        %v451 = vsel %vm449, %v448, %v447
        %v452 = vsel %vm438, 0.0, %v451
        %v453 = vsel %vm439, 0.0, %v450
        %455 = vset.pattern.permute.xlu0 0
        %456 = vperm.xlu0 %455, %v452
        %v457 = vpop.permute.xlu0 %456
        %460 = vset.pattern.permute.xlu0 0
        %461 = vperm.xlu0 %460, %v453
        %v462 = vpop.permute.xlu0 %461
        %v464 = vperm.slane %v446, 0
        %v465 = vmul.f32 %v457, %v464
        %v466 = vmul.f32 %v462, %v464
        %v467 = vrot.slane %v444, 7
        %v468 = vrot.slane %v445, 7
        %vm469 = vcmp.lt.s32.totalorder %v410, 1
        %v470 = vsel %vm469, %v467, %v468
        %v471 = vsel %vm469, %v468, %v467
        %v472 = vsel %vm436, 0.0, %v471
        %v473 = vsel %vm437, 0.0, %v470
        %475 = vset.pattern.permute.xlu0 0
        %476 = vperm.xlu0 %475, %v472
        %v477 = vpop.permute.xlu0 %476
        %480 = vset.pattern.permute.xlu0 0
        %481 = vperm.xlu0 %480, %v473
        %v482 = vpop.permute.xlu0 %481
        %v484 = vperm.slane %v446, 1
        %v485 = vmul.f32 %v477, %v484
        %v486 = vmul.f32 %v482, %v484
        %v487 = vadd.f32 %v465, %v485
        %v488 = vadd.f32 %v466, %v486
        %490 = vset.pattern.permute.xlu0 0
        %491 = vperm.xlu0 %490, %v444
        %v492 = vpop.permute.xlu0 %491
        %495 = vset.pattern.permute.xlu0 0
        %496 = vperm.xlu0 %495, %v445
        %v497 = vpop.permute.xlu0 %496
        %v499 = vperm.slane %v446, 2
        %v500 = vmul.f32 %v492, %v499
        %v501 = vmul.f32 %v497, %v499
        %v502 = vadd.f32 %v487, %v500
        %v503 = vadd.f32 %v488, %v501
        %v504 = vld [vmem:[%s2] sm:$0x1]
        %v506 = vperm.slane %v504, 0
        %v508 = vadd.f32 %v502, %v506
        %v509 = vadd.f32 %v503, %v506
        %v510 = vmax.f32 %v508, 0.0
        %v511 = vmax.f32 %v509, 0.0
        %v512 = vrot.slane %v510, 4
        %v513 = vrot.slane %v511, 4
        %vm514 = vcmp.lt.s32.totalorder %v410, 4
        %v515 = vsel %vm514, %v512, %v513
        %v516 = vsel %vm514, %v513, %v512
        %v517 = vsel %vm440, 1, 0
        %v518 = vsel %vm441, 1, 0
        %vm519 = vcmp.eq.s32.totalorder %v517, 1
        %vm520 = vcmp.eq.s32.totalorder %v518, 1
        %v521 = vsel %vm519, 0.0, %v516
        %v522 = vsel %vm520, 0.0, %v515
        %v523 = vrot.slane %v510, 6
        %v524 = vrot.slane %v511, 6
        %v525 = vsel %vm449, %v523, %v524
        %v526 = vsel %vm449, %v524, %v523
        %v527 = vsel %vm438, 1, 0
        %v528 = vsel %vm439, 1, 0
        %vm529 = vcmp.eq.s32.totalorder %v527, 1
        %vm530 = vcmp.eq.s32.totalorder %v528, 1
        %v531 = vsel %vm529, 0.0, %v526
        %v532 = vsel %vm530, 0.0, %v525
        %535 = vrot.lane.b32.xlu0 %v531, 32
        %v536 = vpop.permute.xlu0 %535
        %537 = vrot.lane.b32.xlu0 %v532, 32
        %v538 = vpop.permute.xlu0 %537
        %543 = vrot.lane.b32.xlu0 %v510, 64
        %v544 = vpop.permute.xlu0 %543
        %545 = vrot.lane.b32.xlu0 %v511, 64
        %v546 = vpop.permute.xlu0 %545
        %vm549 = vcmask 261120
        %v550 = vsel %vm549, %v521, %v536
        %v551 = vsel %vm549, %v522, %v538
        %vm552 = vcmask 523264
        %v553 = vsel %vm552, %v550, %v544
        %v554 = vsel %vm552, %v551, %v546
        %v555 = vld [vmem:[%s3] sm:$0xff]
        %v556 = vld [vmem:[%s3 + $0x8] sm:$0xff]
        %v557 = vld [vmem:[%s3 + $0x10] sm:$0xff]
        %v558 = vld [vmem:[%s3 + $0x18] sm:$0xff]
        %v559 = vld [vmem:[%s3 + $0x20] sm:$0xff]
        %v560 = vld [vmem:[%s3 + $0x28] sm:$0xff]
        %v561 = vld [vmem:[%s3 + $0x30] sm:$0xff]
        %v562 = vld [vmem:[%s3 + $0x38] sm:$0xff]
        %v563 = vld [vmem:[%s3 + $0x40] sm:$0xff]
        %v564 = vld [vmem:[%s3 + $0x48] sm:$0xff]
        %v565 = vld [vmem:[%s3 + $0x50] sm:$0xff]
        %v566 = vld [vmem:[%s3 + $0x58] sm:$0xff]
        %v567 = vld [vmem:[%s4] sm:$0x1]
        %v569 = vperm.slane %v567, 0
        %vm571 = vcmask 785408
        %v573 = vsel %vm571, %v553, 0
        %v576 = vsel %vm571, %v554, 0
        %578 = vmatpush.msra.mxu0 0.0
        %579 = vmatpush.msra.mxu0 0.0
        %580 = vmatpush.msra.mxu0 0.0
        %581 = vmatpush.msra.mxu0 0.0
        %582 = vmatpush.msra.mxu0 %v566
        %583 = vmatpush.msra.mxu0 %v565
        %584 = vmatpush.msra.mxu0 %v564
        %585 = vmatpush.msra.mxu0 %v563
        %586 = vmatpush.msra.mxu0 %v562
        %587 = vmatpush.msra.mxu0 %v561
        %588 = vmatpush.msra.mxu0 %v560
        %589 = vmatpush.msra.mxu0 %v559
        %590 = vmatpush.msra.mxu0 %v558
        %591 = vmatpush.msra.mxu0 %v557
        %592 = vmatpush.msra.mxu0 %v556
        %593 = vmatpush.msra.mxu0 %v555
        %594 = vmatmul.f32.gmra.mxu0 %v573
        %v595 = vpop.f32.mrf.mxu0
        %v596 = vadd.f32 %v569, %v595
        %597 = vmatmul.f32.gmra.mxu0 %v576
        %v598 = vpop.f32.mrf.mxu0
        %v599 = vadd.f32 %v569, %v598
        %600 = vdwg.mxu0
        %v601 = vmax.f32 %v596, 0.0
        %v602 = vmax.f32 %v599, 0.0
        %v603 = vsel %vm442, 1, 0
        %v604 = vsel %vm443, 1, 0
        %vm605 = vcmp.eq.s32.totalorder %v603, 1
        %vm606 = vcmp.eq.s32.totalorder %v604, 1
        %v607 = vsel %vm605, 0.0, %v602
        %v608 = vsel %vm606, 0.0, %v601
        %v609 = vrot.slane %v601, 4
        %v610 = vrot.slane %v602, 4
        %v611 = vsel %vm514, %v609, %v610
        %v612 = vsel %vm514, %v610, %v609
        %v613 = vsel %vm519, 0.0, %v612
        %v614 = vsel %vm520, 0.0, %v611
        %617 = vrot.lane.b32.xlu0 %v613, 64
        %v618 = vpop.permute.xlu0 %617
        %619 = vrot.lane.b32.xlu0 %v614, 64
        %v620 = vpop.permute.xlu0 %619
        %v623 = vsel %vm552, %v607, %v618
        %v624 = vsel %vm552, %v608, %v620
        %v625 = vld [vmem:[%s5] sm:$0xff]
        %v626 = vld [vmem:[%s5 + $0x8] sm:$0xff]
        %v627 = vld [vmem:[%s5 + $0x10] sm:$0xff]
        %v628 = vld [vmem:[%s5 + $0x18] sm:$0xff]
        %v629 = vld [vmem:[%s5 + $0x20] sm:$0xff]
        %v630 = vld [vmem:[%s5 + $0x28] sm:$0xff]
        %v631 = vld [vmem:[%s5 + $0x30] sm:$0xff]
        %v632 = vld [vmem:[%s5 + $0x38] sm:$0xff]
        %v633 = vld [vmem:[%s5 + $0x40] sm:$0xff]
        %v634 = vld [vmem:[%s5 + $0x48] sm:$0xff]
        %v635 = vld [vmem:[%s5 + $0x50] sm:$0xff]
        %v636 = vld [vmem:[%s5 + $0x58] sm:$0xff]
        %v637 = vld [vmem:[%s5 + $0x60] sm:$0xff]
        %v638 = vld [vmem:[%s5 + $0x68] sm:$0xff]
        %v639 = vld [vmem:[%s5 + $0x70] sm:$0xff]
        %v640 = vld [vmem:[%s5 + $0x78] sm:$0xff]
        %v641 = vld [vmem:[%s5 + $0x80] sm:$0xff]
        %v642 = vld [vmem:[%s5 + $0x88] sm:$0xff]
        %v643 = vld [vmem:[%s5 + $0x90] sm:$0xff]
        %v644 = vld [vmem:[%s5 + $0x98] sm:$0xff]
        %v645 = vld [vmem:[%s5 + $0xa0] sm:$0xff]
        %v646 = vld [vmem:[%s5 + $0xa8] sm:$0xff]
        %v647 = vld [vmem:[%s5 + $0xb0] sm:$0xff]
        %v648 = vld [vmem:[%s5 + $0xb8] sm:$0xff]
        %v649 = vld [vmem:[%s6] sm:$0x1]
        %v651 = vperm.slane %v649, 0
        %v654 = vsel %vm552, %v601, 0
        %v657 = vsel %vm552, %v602, 0
        %659 = vmatpush.msra.mxu0 %v640
        %660 = vmatpush.msra.mxu0 %v639
        %661 = vmatpush.msra.mxu0 %v638
        %662 = vmatpush.msra.mxu0 %v637
        %663 = vmatpush.msra.mxu0 %v636
        %664 = vmatpush.msra.mxu0 %v635
        %665 = vmatpush.msra.mxu0 %v634
        %666 = vmatpush.msra.mxu0 %v633
        %667 = vmatpush.msra.mxu0 %v632
        %668 = vmatpush.msra.mxu0 %v631
        %669 = vmatpush.msra.mxu0 %v630
        %670 = vmatpush.msra.mxu0 %v629
        %671 = vmatpush.msra.mxu0 %v628
        %672 = vmatpush.msra.mxu0 %v627
        %673 = vmatpush.msra.mxu0 %v626
        %674 = vmatpush.msra.mxu0 %v625
        %675 = vmatmul.f32.gmra.mxu0 %v623
        %v676 = vpop.f32.mrf.mxu0
        %v677 = vadd.f32 %v651, %v676
        %678 = vmatmul.f32.gmra.mxu0 %v624
        %v679 = vpop.f32.mrf.mxu0
        %v680 = vadd.f32 %v651, %v679
        %681 = vdwg.mxu0
        %682 = vmatpush.msra.mxu0 0.0
        %683 = vmatpush.msra.mxu0 0.0
        %684 = vmatpush.msra.mxu0 0.0
        %685 = vmatpush.msra.mxu0 0.0
        %686 = vmatpush.msra.mxu0 0.0
        %687 = vmatpush.msra.mxu0 0.0
        %688 = vmatpush.msra.mxu0 0.0
        %689 = vmatpush.msra.mxu0 0.0
        %690 = vmatpush.msra.mxu0 %v648
        %691 = vmatpush.msra.mxu0 %v647
        %692 = vmatpush.msra.mxu0 %v646
        %693 = vmatpush.msra.mxu0 %v645
        %694 = vmatpush.msra.mxu0 %v644
        %695 = vmatpush.msra.mxu0 %v643
        %696 = vmatpush.msra.mxu0 %v642
        %697 = vmatpush.msra.mxu0 %v641
        %698 = vmatmul.f32.gmra.mxu0 %v654
        %v699 = vpop.f32.mrf.mxu0
        %v700 = vadd.f32 %v677, %v699
        %701 = vmatmul.f32.gmra.mxu0 %v657
        %v702 = vpop.f32.mrf.mxu0
        %v703 = vadd.f32 %v680, %v702
        %704 = vdwg.mxu0
        %v705 = vmax.f32 %v700, 0.0
        %v706 = vmax.f32 %v703, 0.0
        %v707 = vsel %vm605, 0.0, %v706
        %v708 = vsel %vm606, 0.0, %v705
        %v709 = vld [vmem:[#allocation3] sm:$0xff]
        %v710 = vld [vmem:[#allocation3 + $0x8] sm:$0xff]
        %v711 = vld [vmem:[#allocation3 + $0x10] sm:$0xff]
        %v712 = vld [vmem:[#allocation3 + $0x18] sm:$0xff]
        %v713 = vld [vmem:[#allocation3 + $0x20] sm:$0xff]
        %v714 = vld [vmem:[#allocation3 + $0x28] sm:$0xff]
        %v715 = vld [vmem:[#allocation3 + $0x30] sm:$0xff]
        %v716 = vld [vmem:[#allocation3 + $0x38] sm:$0xff]
        %v717 = vld [vmem:[#allocation3 + $0x40] sm:$0xff]
        %v718 = vld [vmem:[#allocation3 + $0x48] sm:$0xff]
        %v719 = vld [vmem:[#allocation3 + $0x50] sm:$0xff]
        %v720 = vld [vmem:[#allocation3 + $0x58] sm:$0xff]
        %v721 = vld [vmem:[#allocation3 + $0x60] sm:$0xff]
        %v722 = vld [vmem:[#allocation3 + $0x68] sm:$0xff]
        %v723 = vld [vmem:[#allocation3 + $0x70] sm:$0xff]
        %v724 = vld [vmem:[#allocation3 + $0x78] sm:$0xff]
        %v725 = vld [vmem:[#allocation3 + $0x80] sm:$0xff]
        %v726 = vld [vmem:[#allocation3 + $0x88] sm:$0xff]
        %v727 = vld [vmem:[#allocation3 + $0x90] sm:$0xff]
        %v728 = vld [vmem:[#allocation3 + $0x98] sm:$0xff]
        %v729 = vld [vmem:[#allocation3 + $0xa0] sm:$0xff]
        %v730 = vld [vmem:[#allocation3 + $0xa8] sm:$0xff]
        %v731 = vld [vmem:[#allocation3 + $0xb0] sm:$0xff]
        %v732 = vld [vmem:[#allocation3 + $0xb8] sm:$0xff]
        %v733 = vld [vmem:[#allocation3 + $0xc0] sm:$0xff]
        %v734 = vld [vmem:[#allocation3 + $0xc8] sm:$0xff]
        %v735 = vld [vmem:[#allocation3 + $0xd0] sm:$0xff]
        %v736 = vld [vmem:[#allocation3 + $0xd8] sm:$0xff]
        %v737 = vld [vmem:[#allocation3 + $0xe0] sm:$0xff]
        %v738 = vld [vmem:[#allocation3 + $0xe8] sm:$0xff]
        %v739 = vld [vmem:[#allocation3 + $0xf0] sm:$0xff]
        %v740 = vld [vmem:[#allocation3 + $0xf8] sm:$0xff]
        %v741 = vld [vmem:[#allocation3 + $0x100] sm:$0xff]
        %v742 = vld [vmem:[#allocation3 + $0x108] sm:$0xff]
        %v743 = vld [vmem:[#allocation3 + $0x110] sm:$0xff]
        %v744 = vld [vmem:[#allocation3 + $0x118] sm:$0xff]
        %v745 = vld [vmem:[#allocation3 + $0x120] sm:$0xff]
        %v746 = vld [vmem:[#allocation3 + $0x128] sm:$0xff]
        %v747 = vld [vmem:[#allocation3 + $0x130] sm:$0xff]
        %v748 = vld [vmem:[#allocation3 + $0x138] sm:$0xff]
        %v749 = vld [vmem:[#allocation3 + $0x140] sm:$0xff]
        %v750 = vld [vmem:[#allocation3 + $0x148] sm:$0xff]
        %v751 = vld [vmem:[#allocation3 + $0x150] sm:$0xff]
        %v752 = vld [vmem:[#allocation3 + $0x158] sm:$0xff]
        %v753 = vld [vmem:[#allocation3 + $0x160] sm:$0xff]
        %v754 = vld [vmem:[#allocation3 + $0x168] sm:$0xff]
        %v755 = vld [vmem:[#allocation3 + $0x170] sm:$0xff]
        %v756 = vld [vmem:[#allocation3 + $0x178] sm:$0xff]
        %v757 = vld [vmem:[#allocation3 + $0x180] sm:$0xff]
        %v758 = vld [vmem:[#allocation3 + $0x188] sm:$0xff]
        %v759 = vld [vmem:[#allocation3 + $0x190] sm:$0xff]
        %v760 = vld [vmem:[#allocation3 + $0x198] sm:$0xff]
        %v761 = vld [vmem:[#allocation3 + $0x1a0] sm:$0xff]
        %v762 = vld [vmem:[#allocation3 + $0x1a8] sm:$0xff]
        %v763 = vld [vmem:[#allocation3 + $0x1b0] sm:$0xff]
        %v764 = vld [vmem:[#allocation3 + $0x1b8] sm:$0xff]
        %v765 = vld [vmem:[#allocation3 + $0x1c0] sm:$0xff]
        %v766 = vld [vmem:[#allocation3 + $0x1c8] sm:$0xff]
        %v767 = vld [vmem:[#allocation3 + $0x1d0] sm:$0xff]
        %v768 = vld [vmem:[#allocation3 + $0x1d8] sm:$0xff]
        %v769 = vld [vmem:[#allocation3 + $0x1e0] sm:$0xff]
        %v770 = vld [vmem:[#allocation3 + $0x1e8] sm:$0xff]
        %v771 = vld [vmem:[#allocation3 + $0x1f0] sm:$0xff]
        %v772 = vld [vmem:[#allocation3 + $0x1f8] sm:$0xff]
        %v773 = vld [vmem:[#allocation3 + $0x200] sm:$0xff]
        %v774 = vld [vmem:[#allocation3 + $0x208] sm:$0xff]
        %v775 = vld [vmem:[#allocation3 + $0x210] sm:$0xff]
        %v776 = vld [vmem:[#allocation3 + $0x218] sm:$0xff]
        %v777 = vld [vmem:[#allocation3 + $0x220] sm:$0xff]
        %v778 = vld [vmem:[#allocation3 + $0x228] sm:$0xff]
        %v779 = vld [vmem:[#allocation3 + $0x230] sm:$0xff]
        %v780 = vld [vmem:[#allocation3 + $0x238] sm:$0xff]
        %v781 = vld [vmem:[#allocation3 + $0x240] sm:$0xff]
        %v782 = vld [vmem:[#allocation3 + $0x248] sm:$0xff]
        %v783 = vld [vmem:[#allocation3 + $0x250] sm:$0xff]
        %v784 = vld [vmem:[#allocation3 + $0x258] sm:$0xff]
        %v785 = vld [vmem:[#allocation3 + $0x260] sm:$0xff]
        %v786 = vld [vmem:[#allocation3 + $0x268] sm:$0xff]
        %v787 = vld [vmem:[#allocation3 + $0x270] sm:$0xff]
        %v788 = vld [vmem:[#allocation3 + $0x278] sm:$0xff]
        %v789 = vld [vmem:[#allocation3 + $0x280] sm:$0xff]
        %v790 = vld [vmem:[#allocation3 + $0x288] sm:$0xff]
        %v791 = vld [vmem:[#allocation3 + $0x290] sm:$0xff]
        %v792 = vld [vmem:[#allocation3 + $0x298] sm:$0xff]
        %v793 = vld [vmem:[#allocation3 + $0x2a0] sm:$0xff]
        %v794 = vld [vmem:[#allocation3 + $0x2a8] sm:$0xff]
        %v795 = vld [vmem:[#allocation3 + $0x2b0] sm:$0xff]
        %v796 = vld [vmem:[#allocation3 + $0x2b8] sm:$0xff]
        %v797 = vld [vmem:[#allocation3 + $0x2c0] sm:$0xff]
        %v798 = vld [vmem:[#allocation3 + $0x2c8] sm:$0xff]
        %v799 = vld [vmem:[#allocation3 + $0x2d0] sm:$0xff]
        %v800 = vld [vmem:[#allocation3 + $0x2d8] sm:$0xff]
        %v801 = vld [vmem:[#allocation3 + $0x2e0] sm:$0xff]
        %v802 = vld [vmem:[#allocation3 + $0x2e8] sm:$0xff]
        %v803 = vld [vmem:[#allocation3 + $0x2f0] sm:$0xff]
        %v804 = vld [vmem:[#allocation3 + $0x2f8] sm:$0xff]
        %v805 = vld [vmem:[%s8] sm:$0x3]
        %v807 = vperm.slane %v805, 0
        %v808 = vperm.slane %v805, 1
        %811 = vmatpush.msra.mxu0 %v739
        %812 = vmatpush.msra.mxu0 %v737
        %813 = vmatpush.msra.mxu0 %v735
        %814 = vmatpush.msra.mxu0 %v733
        %815 = vmatpush.msra.mxu0 %v731
        %816 = vmatpush.msra.mxu0 %v729
        %817 = vmatpush.msra.mxu0 %v727
        %818 = vmatpush.msra.mxu0 %v725
        %819 = vmatpush.msra.mxu0 %v723
        %820 = vmatpush.msra.mxu0 %v721
        %821 = vmatpush.msra.mxu0 %v719
        %822 = vmatpush.msra.mxu0 %v717
        %823 = vmatpush.msra.mxu0 %v715
        %824 = vmatpush.msra.mxu0 %v713
        %825 = vmatpush.msra.mxu0 %v711
        %826 = vmatpush.msra.mxu0 %v709
        %827 = vmatmul.f32.gmra.mxu0 0.0
        %v828 = vpop.f32.mrf.mxu0
        %v829 = vadd.f32 %v807, %v828
        %830 = vmatmul.f32.gmra.mxu0 0.0
        %v831 = vpop.f32.mrf.mxu0
        %v832 = vadd.f32 %v807, %v831
        %833 = vdwg.mxu0
        %834 = vmatpush.msra.mxu0 %v771
        %835 = vmatpush.msra.mxu0 %v769
        %836 = vmatpush.msra.mxu0 %v767
        %837 = vmatpush.msra.mxu0 %v765
        %838 = vmatpush.msra.mxu0 %v763
        %839 = vmatpush.msra.mxu0 %v761
        %840 = vmatpush.msra.mxu0 %v759
        %841 = vmatpush.msra.mxu0 %v757
        %842 = vmatpush.msra.mxu0 %v755
        %843 = vmatpush.msra.mxu0 %v753
        %844 = vmatpush.msra.mxu0 %v751
        %845 = vmatpush.msra.mxu0 %v749
        %846 = vmatpush.msra.mxu0 %v747
        %847 = vmatpush.msra.mxu0 %v745
        %848 = vmatpush.msra.mxu0 %v743
        %849 = vmatpush.msra.mxu0 %v741
        %850 = vmatmul.f32.gmra.mxu0 %v707
        %v851 = vpop.f32.mrf.mxu0
        %v852 = vadd.f32 %v829, %v851
        %853 = vmatmul.f32.gmra.mxu0 %v708
        %v854 = vpop.f32.mrf.mxu0
        %v855 = vadd.f32 %v832, %v854
        %856 = vdwg.mxu0
        %857 = vmatpush.msra.mxu0 %v803
        %858 = vmatpush.msra.mxu0 %v801
        %859 = vmatpush.msra.mxu0 %v799
        %860 = vmatpush.msra.mxu0 %v797
        %861 = vmatpush.msra.mxu0 %v795
        %862 = vmatpush.msra.mxu0 %v793
        %863 = vmatpush.msra.mxu0 %v791
        %864 = vmatpush.msra.mxu0 %v789
        %865 = vmatpush.msra.mxu0 %v787
        %866 = vmatpush.msra.mxu0 %v785
        %867 = vmatpush.msra.mxu0 %v783
        %868 = vmatpush.msra.mxu0 %v781
        %869 = vmatpush.msra.mxu0 %v779
        %870 = vmatpush.msra.mxu0 %v777
        %871 = vmatpush.msra.mxu0 %v775
        %872 = vmatpush.msra.mxu0 %v773
        %873 = vmatmul.f32.gmra.mxu0 %v705
        %v874 = vpop.f32.mrf.mxu0
        %v875 = vadd.f32 %v852, %v874
        %876 = vmatmul.f32.gmra.mxu0 %v706
        %v877 = vpop.f32.mrf.mxu0
        %v878 = vadd.f32 %v855, %v877
        %879 = vdwg.mxu0
        %880 = vmatpush.msra.mxu0 %v740
        %881 = vmatpush.msra.mxu0 %v738
        %882 = vmatpush.msra.mxu0 %v736
        %883 = vmatpush.msra.mxu0 %v734
        %884 = vmatpush.msra.mxu0 %v732
        %885 = vmatpush.msra.mxu0 %v730
        %886 = vmatpush.msra.mxu0 %v728
        %887 = vmatpush.msra.mxu0 %v726
        %888 = vmatpush.msra.mxu0 %v724
        %889 = vmatpush.msra.mxu0 %v722
        %890 = vmatpush.msra.mxu0 %v720
        %891 = vmatpush.msra.mxu0 %v718
        %892 = vmatpush.msra.mxu0 %v716
        %893 = vmatpush.msra.mxu0 %v714
        %894 = vmatpush.msra.mxu0 %v712
        %895 = vmatpush.msra.mxu0 %v710
        %896 = vmatmul.f32.gmra.mxu0 0.0
        %v897 = vpop.f32.mrf.mxu0
        %v898 = vadd.f32 %v808, %v897
        %899 = vmatmul.f32.gmra.mxu0 0.0
        %v900 = vpop.f32.mrf.mxu0
        %v901 = vadd.f32 %v808, %v900
        %902 = vdwg.mxu0
        %903 = vmatpush.msra.mxu0 %v772
        %904 = vmatpush.msra.mxu0 %v770
        %905 = vmatpush.msra.mxu0 %v768
        %906 = vmatpush.msra.mxu0 %v766
        %907 = vmatpush.msra.mxu0 %v764
        %908 = vmatpush.msra.mxu0 %v762
        %909 = vmatpush.msra.mxu0 %v760
        %910 = vmatpush.msra.mxu0 %v758
        %911 = vmatpush.msra.mxu0 %v756
        %912 = vmatpush.msra.mxu0 %v754
        %913 = vmatpush.msra.mxu0 %v752
        %914 = vmatpush.msra.mxu0 %v750
        %915 = vmatpush.msra.mxu0 %v748
        %916 = vmatpush.msra.mxu0 %v746
        %917 = vmatpush.msra.mxu0 %v744
        %918 = vmatpush.msra.mxu0 %v742
        %919 = vmatmul.f32.gmra.mxu0 %v707
        %v920 = vpop.f32.mrf.mxu0
        %v921 = vadd.f32 %v898, %v920
        %922 = vmatmul.f32.gmra.mxu0 %v708
        %v923 = vpop.f32.mrf.mxu0
        %v924 = vadd.f32 %v901, %v923
        %925 = vdwg.mxu0
        %926 = vmatpush.msra.mxu0 %v804
        %927 = vmatpush.msra.mxu0 %v802
        %928 = vmatpush.msra.mxu0 %v800
        %929 = vmatpush.msra.mxu0 %v798
        %930 = vmatpush.msra.mxu0 %v796
        %931 = vmatpush.msra.mxu0 %v794
        %932 = vmatpush.msra.mxu0 %v792
        %933 = vmatpush.msra.mxu0 %v790
        %934 = vmatpush.msra.mxu0 %v788
        %935 = vmatpush.msra.mxu0 %v786
        %936 = vmatpush.msra.mxu0 %v784
        %937 = vmatpush.msra.mxu0 %v782
        %938 = vmatpush.msra.mxu0 %v780
        %939 = vmatpush.msra.mxu0 %v778
        %940 = vmatpush.msra.mxu0 %v776
        %941 = vmatpush.msra.mxu0 %v774
        %942 = vmatmul.f32.gmra.mxu0 %v705
        %v943 = vpop.f32.mrf.mxu0
        %v944 = vadd.f32 %v921, %v943
        %945 = vmatmul.f32.gmra.mxu0 %v706
        %v946 = vpop.f32.mrf.mxu0
        %v947 = vadd.f32 %v924, %v946
        %948 = vdwg.mxu0
        %v949 = vmax.f32 %v875, 0.0
        %v950 = vmax.f32 %v944, 0.0
        %v951 = vmax.f32 %v878, 0.0
        %v952 = vmax.f32 %v947, 0.0
        %v953 = vld [vmem:[%s9] sm:$0xff]
        %v954 = vld [vmem:[%s9 + $0x8] sm:$0xff]
        %v955 = vld [vmem:[%s9 + $0x10] sm:$0xff]
        %v956 = vld [vmem:[%s9 + $0x18] sm:$0xff]
        %v957 = vld [vmem:[%s9 + $0x20] sm:$0xff]
        %v958 = vld [vmem:[%s9 + $0x28] sm:$0xff]
        %v959 = vld [vmem:[%s9 + $0x30] sm:$0xff]
        %v960 = vld [vmem:[%s9 + $0x38] sm:$0xff]
        %v961 = vld [vmem:[%s9 + $0x40] sm:$0xff]
        %v962 = vld [vmem:[%s9 + $0x48] sm:$0xff]
        %v963 = vld [vmem:[%s9 + $0x50] sm:$0xff]
        %v964 = vld [vmem:[%s9 + $0x58] sm:$0xff]
        %v965 = vld [vmem:[%s9 + $0x60] sm:$0xff]
        %v966 = vld [vmem:[%s9 + $0x68] sm:$0xff]
        %v967 = vld [vmem:[%s9 + $0x70] sm:$0xff]
        %v968 = vld [vmem:[%s9 + $0x78] sm:$0xff]
        %v969 = vld [vmem:[%s9 + $0x80] sm:$0xff]
        %v970 = vld [vmem:[%s9 + $0x88] sm:$0xff]
        %v971 = vld [vmem:[%s9 + $0x90] sm:$0xff]
        %v972 = vld [vmem:[%s9 + $0x98] sm:$0xff]
        %v973 = vld [vmem:[%s9 + $0xa0] sm:$0xff]
        %v974 = vld [vmem:[%s9 + $0xa8] sm:$0xff]
        %v975 = vld [vmem:[%s9 + $0xb0] sm:$0xff]
        %v976 = vld [vmem:[%s9 + $0xb8] sm:$0xff]
        %v977 = vld [vmem:[%s9 + $0xc0] sm:$0xff]
        %v978 = vld [vmem:[%s9 + $0xc8] sm:$0xff]
        %v979 = vld [vmem:[%s9 + $0xd0] sm:$0xff]
        %v980 = vld [vmem:[%s9 + $0xd8] sm:$0xff]
        %v981 = vld [vmem:[%s9 + $0xe0] sm:$0xff]
        %v982 = vld [vmem:[%s9 + $0xe8] sm:$0xff]
        %v983 = vld [vmem:[%s9 + $0xf0] sm:$0xff]
        %v984 = vld [vmem:[%s9 + $0xf8] sm:$0xff]
        %v985 = vld [vmem:[#allocation2] sm:$0x1]
        %v987 = vperm.slane %v985, 0
        %989 = vmatpush.msra.mxu0 %v968
        %990 = vmatpush.msra.mxu0 %v967
        %991 = vmatpush.msra.mxu0 %v966
        %992 = vmatpush.msra.mxu0 %v965
        %993 = vmatpush.msra.mxu0 %v964
        %994 = vmatpush.msra.mxu0 %v963
        %995 = vmatpush.msra.mxu0 %v962
        %996 = vmatpush.msra.mxu0 %v961
        %997 = vmatpush.msra.mxu0 %v960
        %998 = vmatpush.msra.mxu0 %v959
        %999 = vmatpush.msra.mxu0 %v958
        %1000 = vmatpush.msra.mxu0 %v957
        %1001 = vmatpush.msra.mxu0 %v956
        %1002 = vmatpush.msra.mxu0 %v955
        %1003 = vmatpush.msra.mxu0 %v954
        %1004 = vmatpush.msra.mxu0 %v953
        %1005 = vmatmul.f32.gmra.mxu0 %v949
        %v1006 = vpop.f32.mrf.mxu0
        %v1007 = vadd.f32 %v987, %v1006
        %1008 = vmatmul.f32.gmra.mxu0 %v951
        %v1009 = vpop.f32.mrf.mxu0
        %v1010 = vadd.f32 %v987, %v1009
        %1011 = vdwg.mxu0
        %1012 = vmatpush.msra.mxu0 %v984
        %1013 = vmatpush.msra.mxu0 %v983
        %1014 = vmatpush.msra.mxu0 %v982
        %1015 = vmatpush.msra.mxu0 %v981
        %1016 = vmatpush.msra.mxu0 %v980
        %1017 = vmatpush.msra.mxu0 %v979
        %1018 = vmatpush.msra.mxu0 %v978
        %1019 = vmatpush.msra.mxu0 %v977
        %1020 = vmatpush.msra.mxu0 %v976
        %1021 = vmatpush.msra.mxu0 %v975
        %1022 = vmatpush.msra.mxu0 %v974
        %1023 = vmatpush.msra.mxu0 %v973
        %1024 = vmatpush.msra.mxu0 %v972
        %1025 = vmatpush.msra.mxu0 %v971
        %1026 = vmatpush.msra.mxu0 %v970
        %1027 = vmatpush.msra.mxu0 %v969
        %1028 = vmatmul.f32.gmra.mxu0 %v950
        %v1029 = vpop.f32.mrf.mxu0
        %v1030 = vadd.f32 %v1007, %v1029
        %1031 = vmatmul.f32.gmra.mxu0 %v952
        %v1032 = vpop.f32.mrf.mxu0
        %v1033 = vadd.f32 %v1010, %v1032
        %1034 = vdwg.mxu0
        %vm1035 = vcmask 7168
        %1036 = vst.msk [vmem:[%s407] sm:$0xff] %vm1035, %v1030
        %1037 = vst.msk [vmem:[%s407 + $0x8] sm:$0xff] %vm1035, %v1033
        %s1038 = smul.u32 2, %s25
        %p1039 = scmp.lt.s32.totalorder %s1038, 3
        %s1040 = scalar_select %p1039, %s1038, 3
        %s1041 = smul.addr %s1040, 8
        %s1042 = scalar_lea.vmem %s11, %s1041
        // Predicated region
        $region69: #{tpu_custom_call.1} parent=63 // pred_check
          %p1043 = pneg %p279
        $region70: #{tpu_custom_call.1} parent=63 // pred_check_branch
          %1045 = sbr.rel (%p1043) target = $region72
        $region71: #{tpu_custom_call.1} parent=63 // pred_region
          %s1046 = smul.u32 2, %s25
        $region72: #{tpu_custom_call.1} parent=63 // pred_fallthru
          _
      $region64: #{tpu_custom_call.1} parent=5 // pred_fallthru
        _
      %p1047 = scmp.le.s32.totalorder 2, %s20
      // Predicated region
      $region73: #{tpu_custom_call.1} parent=5 // pred_check
        %p1048 = pneg %p1047
      $region74: #{tpu_custom_call.1} parent=5 // pred_check_branch
        %1050 = sbr.rel (%p1048) target = $region76
      $region75: #{tpu_custom_call.1} parent=5 // pred_region
        %s1051 = ssub.s32 %s20, 2
        // Predicated region
        $region77: #{tpu_custom_call.1} parent=75 // pred_check
          %p1052 = pneg %p285
        $region78: #{tpu_custom_call.1} parent=75 // pred_check_branch
          %1054 = sbr.rel (%p1052) target = $region80
        $region79: #{tpu_custom_call.1} parent=75 // pred_region
          %s1055 = smul.u32 2, %s26
          %p1056 = scmp.lt.s32.totalorder %s1055, 3
          %s1057 = scalar_select %p1056, %s1055, 3
          %s1058 = smul.addr %s1057, 8
          %s1059 = scalar_lea.vmem %s11, %s1058
        $region80: #{tpu_custom_call.1} parent=75 // pred_fallthru
          _
      $region76: #{tpu_custom_call.1} parent=5 // pred_fallthru
        _
    $region6: #{tpu_custom_call.1} parent=1 // loop_footer
      %s24 = sadd.s32 1, %s20
    $region7: #{tpu_custom_call.1} parent=1 // loop_footer_branch
      %19 = sbr.rel target = $region3
    $region8: #{tpu_custom_call.1} parent=1 // loop_exit
      _
    %1060 = vsyncpa [#allocation4], 1
    %s1061 = scalar_lea.sflag [#allocation4], 1
    %1062 = vsyncpa %s1061, 1

</llo_original>
